<compile_context>
chip_gen: v6e
topology: v6e:2x2x1
jax: 0.10.0
libtpu: 0.0.40
codegen_flags: <defaults>
</compile_context>

<pallas_src>
import jax
import jax.numpy as jnp
from jax.experimental import pallas as pl
from jax.experimental.pallas import tpu as pltpu

VP_DIM = 56         # fixed by the module (torch.linspace(1, 1, 56))
NUM_SPLITS = 2      # outer "parallel" grid axis (v7x megacore); serial elsewhere
MAX_TILE_M = 4096   # rows per block: ~2 MiB / input / buffer in f32 (lane-padded)


def _round_up(x, m):
    return ((x + m - 1) // m) * m


def _vploss_kernel(vp_ref, lab_ref, w_ref, sum_ref, cnt_ref, acc_sum, acc_cnt):
    step = pl.program_id(1)                      # inner (row-tile / reduction) axis

    @pl.when(step == 0)
    def _init():
        acc_sum[...] = jnp.zeros_like(acc_sum)
        acc_cnt[...] = jnp.zeros_like(acc_cnt)

    vp = vp_ref[...].astype(jnp.float32)         # (TILE_M, 56)
    lab = lab_ref[...].astype(jnp.float32)       # (TILE_M, 56)
    w = w_ref[...]                               # (1, 56) f32, sublane-broadcasts

    # Sigmoid only affects column 0: select via lane iota (same vreg count as a
    # width-1 lane slice, so no extra EUP work is saved by slicing).
    col0 = jax.lax.broadcasted_iota(jnp.int32, vp.shape, 1) == 0
    vp = jnp.where(col0, jax.nn.sigmoid(vp), vp)

    # Mask on the *weighted* label:  (lab * w != 0)  <=>  (lab != 0) & (w != 0).
    mask = (lab != 0.0) & (w != 0.0)
    absdiff = jnp.abs((vp - lab) * w)            # == |vp*w - lab*w|

    # Elementwise partial accumulation (VPU only); padded rows have label 0 so
    # they contribute nothing to sum or count.
    acc_sum[...] += jnp.where(mask, absdiff, 0.0)
    acc_cnt[...] += mask.astype(jnp.float32)

    @pl.when(step == pl.num_programs(1) - 1)
    def _finalize():
        # One cross-lane/sublane reduce per split (O(1) XLU work); outputs are
        # broadcast-filled (8,128) VMEM blocks, read back as [c, 0, 0].
        sum_ref[...] = jnp.full((1, 8, 128), jnp.sum(acc_sum[...]), jnp.float32)
        cnt_ref[...] = jnp.full((1, 8, 128), jnp.sum(acc_cnt[...]), jnp.float32)


def vp_loss_pallas(vp, vp_label, lambda_vp):
    """vp, vp_label: float arrays of shape (..., 56). Returns scalar f32 loss."""
    assert vp.shape == vp_label.shape and vp.shape[-1] == VP_DIM

    # Deterministic "parameter" init, matching the module __init__.
    vp_weights = jnp.ones((VP_DIM,), jnp.float32).at[0].add(
        jnp.asarray(lambda_vp, jnp.float32))

    n = 1
    for d in vp.shape[:-1]:
        n *= d

    # Natural layout: (N, 56).  Reshape is free; no HBM transpose pass.
    vp2 = vp.reshape(n, VP_DIM)
    lab2 = vp_label.reshape(n, VP_DIM)

    tile_m = min(MAX_TILE_M, _round_up(n, 8))
    n_pad = _round_up(n, tile_m * NUM_SPLITS)
    if n_pad != n:
        pad = ((0, n_pad - n), (0, 0))
        vp2 = jnp.pad(vp2, pad)          # padded labels are 0 -> masked out
        lab2 = jnp.pad(lab2, pad)
    tiles_per_split = n_pad // (tile_m * NUM_SPLITS)

    w2 = vp_weights.reshape(1, VP_DIM)

    itemsize = jnp.dtype(vp.dtype).itemsize
    cost = pl.CostEstimate(
        flops=10 * n * VP_DIM,
        transcendentals=n,                       # sigmoid on column 0 only
        bytes_accessed=2 * n * VP_DIM * itemsize,
    )

    sums, cnts = pl.pallas_call(
        _vploss_kernel,
        out_shape=(
            jax.ShapeDtypeStruct((NUM_SPLITS, 8, 128), jnp.float32),
            jax.ShapeDtypeStruct((NUM_SPLITS, 8, 128), jnp.float32),
        ),
        grid=(NUM_SPLITS, tiles_per_split),
        in_specs=[
            pl.BlockSpec((tile_m, VP_DIM),
                         lambda c, i: (c * tiles_per_split + i, 0)),
            pl.BlockSpec((tile_m, VP_DIM),
                         lambda c, i: (c * tiles_per_split + i, 0)),
            pl.BlockSpec((1, VP_DIM), lambda c, i: (0, 0)),
        ],
        out_specs=(
            pl.BlockSpec((1, 8, 128), lambda c, i: (c, 0, 0)),
            pl.BlockSpec((1, 8, 128), lambda c, i: (c, 0, 0)),
        ),
        scratch_shapes=[
            pltpu.VMEM((tile_m, VP_DIM), jnp.float32),   # partial |diff| sums
            pltpu.VMEM((tile_m, VP_DIM), jnp.float32),   # partial mask counts
        ],
        compiler_params=pltpu.CompilerParams(
            dimension_semantics=("parallel", "arbitrary"),
            vmem_limit_bytes=32 * 1024 * 1024,
        ),
        cost_estimate=cost,
    )(vp2, lab2, w2)

    total = jnp.sum(sums[:, 0, 0])
    count = jnp.sum(cnts[:, 0, 0])
    # 'mean' over the masked selection; 0/0 -> NaN matches PyTorch's mean of an
    # empty selection.
    return total / count


def _reference_loss(vp, vp_label, lambda_vp):
    w = jnp.ones((VP_DIM,), jnp.float32).at[0].add(jnp.asarray(lambda_vp, jnp.float32))
    vp = vp.astype(jnp.float32)
    lab = vp_label.astype(jnp.float32)
    vp = vp.at[..., 0].set(jax.nn.sigmoid(vp[..., 0]))
    vp_w = vp * w
    lab_w = lab * w
    m = lab_w != 0.0
    return jnp.sum(jnp.where(m, jnp.abs(vp_w - lab_w), 0.0)) / jnp.sum(
        m.astype(jnp.float32)
    )


if __name__ == "__main__":
    key = jax.random.PRNGKey(0)
    k1, k2, k3 = jax.random.split(key, 3)

    batch, num_vp = 2, 8                        # vp tensor: (batch, num_vp, 56)
    vp = jax.random.normal(k1, (batch, num_vp, VP_DIM), jnp.float32)
    vp_label = jax.random.normal(k2, (batch, num_vp, VP_DIM), jnp.float32)
    # sparsify labels so the != 0 mask is non-trivial
    keep = jax.random.bernoulli(k3, 0.5, (batch, num_vp, VP_DIM))
    vp_label = jnp.where(keep, vp_label, 0.0)

    loss_fn = jax.jit(vp_loss_pallas)

    # Exercise both the generic weights and the w[0] == 0 (lambda_vp == -1) path.
    for lam in (5.0, -1.0):
        loss = jax.block_until_ready(loss_fn(vp, vp_label, lam))
        ref = _reference_loss(vp, vp_label, lam)
        assert jnp.allclose(loss, ref, atol=1e-5, rtol=1e-5), (lam, loss, ref)

    print("KERNEL_OK")
</pallas_src>

<mosaic_0001>
module attributes {stable_mosaic.version = 11 : i64} {
  func.func @_vploss_kernel(%arg0: i32, %arg1: i32, %arg2: memref<16x56xf32, #tpu.memory_space<vmem>>, %arg3: memref<16x56xf32, #tpu.memory_space<vmem>>, %arg4: memref<1x56xf32, #tpu.memory_space<vmem>>, %arg5: memref<1x8x128xf32, #tpu.memory_space<vmem>>, %arg6: memref<1x8x128xf32, #tpu.memory_space<vmem>>, %arg7: memref<16x56xf32, #tpu.memory_space<vmem>>, %arg8: memref<16x56xf32, #tpu.memory_space<vmem>>) attributes {dimension_semantics = [#tpu.dimension_semantics<parallel>, #tpu.dimension_semantics<arbitrary>], iteration_bounds = array<i64: 2, 1>, scalar_prefetch = 0 : i64, scratch_operands = 2 : i64, tpu.core_type = #tpu.core_type<tc>, window_params = [{transform_indices = @transform_0, window_bounds = array<i64: 16, 56>}, {transform_indices = @transform_1, window_bounds = array<i64: 16, 56>}, {pipeline_mode = #tpu.pipeline_mode<synchronous>, transform_indices = @transform_2, window_bounds = array<i64: 1, 56>}, {transform_indices = @transform_3, window_bounds = array<i64: 1, 8, 128>}, {transform_indices = @transform_4, window_bounds = array<i64: 1, 8, 128>}]} {
    %c0_i32 = arith.constant 0 : i32
    %0 = arith.cmpi eq, %arg1, %c0_i32 : i32
    %1 = arith.extui %0 : i1 to i32
    %c0_i32_0 = arith.constant 0 : i32
    %2 = arith.cmpi ne, %1, %c0_i32_0 : i32
    scf.if %2 {
      %cst_20 = arith.constant 0.000000e+00 : f32
      %38 = vector.broadcast %cst_20 : f32 to vector<16x56xf32>
      %c0_21 = arith.constant 0 : index
      %c0_22 = arith.constant 0 : index
      %39 = vector.load %arg7[%c0_21, %c0_22] : memref<16x56xf32, #tpu.memory_space<vmem>>, vector<16x56xf32>
      tpu.vector_store %arg7[%c0_21, %c0_22], %38 {strides = array<i32>} : memref<16x56xf32, #tpu.memory_space<vmem>>, vector<16x56xf32>,
      %cst_23 = arith.constant 0.000000e+00 : f32
      %40 = vector.broadcast %cst_23 : f32 to vector<16x56xf32>
      %c0_24 = arith.constant 0 : index
      %c0_25 = arith.constant 0 : index
      %41 = vector.load %arg8[%c0_24, %c0_25] : memref<16x56xf32, #tpu.memory_space<vmem>>, vector<16x56xf32>
      tpu.vector_store %arg8[%c0_24, %c0_25], %40 {strides = array<i32>} : memref<16x56xf32, #tpu.memory_space<vmem>>, vector<16x56xf32>,
    } else {
    }
    %c0 = arith.constant 0 : index
    %c0_1 = arith.constant 0 : index
    %3 = vector.load %arg2[%c0, %c0_1] : memref<16x56xf32, #tpu.memory_space<vmem>>, vector<16x56xf32>
    %c0_2 = arith.constant 0 : index
    %c0_3 = arith.constant 0 : index
    %4 = vector.load %arg3[%c0_2, %c0_3] : memref<16x56xf32, #tpu.memory_space<vmem>>, vector<16x56xf32>
    %c0_4 = arith.constant 0 : index
    %c0_5 = arith.constant 0 : index
    %5 = vector.load %arg4[%c0_4, %c0_5] : memref<1x56xf32, #tpu.memory_space<vmem>>, vector<1x56xf32>
    %6 = tpu.iota {dimensions = array<i32: 1>} : vector<16x56xi32>
    %c0_i32_6 = arith.constant 0 : i32
    %7 = vector.broadcast %c0_i32_6 : i32 to vector<16x56xi32>
    %8 = arith.cmpi eq, %6, %7 : vector<16x56xi32>
    %9 = arith.negf %3 : vector<16x56xf32>
    %10 = math.exp %9 : vector<16x56xf32>
    %cst = arith.constant 1.000000e+00 : f32
    %11 = vector.broadcast %cst : f32 to vector<16x56xf32>
    %12 = arith.addf %11, %10 : vector<16x56xf32>
    %13 = arith.divf %11, %12 : vector<16x56xf32>
    %14 = arith.select %8, %13, %3 : vector<16x56xi1>, vector<16x56xf32>
    %cst_7 = arith.constant 0.000000e+00 : f32
    %15 = vector.broadcast %cst_7 : f32 to vector<16x56xf32>
    %16 = arith.cmpf one, %4, %15 : vector<16x56xf32>
    %cst_8 = arith.constant 0.000000e+00 : f32
    %17 = vector.broadcast %cst_8 : f32 to vector<1x56xf32>
    %18 = arith.cmpf one, %5, %17 : vector<1x56xf32>
    %19 = vector.broadcast %18 : vector<1x56xi1> to vector<16x56xi1>
    %20 = arith.andi %16, %19 : vector<16x56xi1>
    %21 = arith.subf %14, %4 : vector<16x56xf32>
    %22 = vector.broadcast %5 : vector<1x56xf32> to vector<16x56xf32>
    %23 = arith.mulf %21, %22 : vector<16x56xf32>
    %24 = math.absf %23 : vector<16x56xf32>
    %c0_9 = arith.constant 0 : index
    %c0_10 = arith.constant 0 : index
    %25 = vector.load %arg7[%c0_9, %c0_10] : memref<16x56xf32, #tpu.memory_space<vmem>>, vector<16x56xf32>
    %cst_11 = arith.constant 0.000000e+00 : f32
    %26 = vector.broadcast %cst_11 : f32 to vector<16x56xf32>
    %27 = arith.select %20, %24, %26 : vector<16x56xi1>, vector<16x56xf32>
    %28 = arith.addf %25, %27 : vector<16x56xf32>
    %c0_12 = arith.constant 0 : index
    %c0_13 = arith.constant 0 : index
    %29 = vector.load %arg7[%c0_12, %c0_13] : memref<16x56xf32, #tpu.memory_space<vmem>>, vector<16x56xf32>
    tpu.vector_store %arg7[%c0_12, %c0_13], %28 {strides = array<i32>} : memref<16x56xf32, #tpu.memory_space<vmem>>, vector<16x56xf32>,
    %c0_14 = arith.constant 0 : index
    %c0_15 = arith.constant 0 : index
    %30 = vector.load %arg8[%c0_14, %c0_15] : memref<16x56xf32, #tpu.memory_space<vmem>>, vector<16x56xf32>
    %31 = arith.extui %20 : vector<16x56xi1> to vector<16x56xi32>
    %32 = arith.sitofp %31 : vector<16x56xi32> to vector<16x56xf32>
    %33 = arith.addf %30, %32 : vector<16x56xf32>
    %c0_16 = arith.constant 0 : index
    %c0_17 = arith.constant 0 : index
    %34 = vector.load %arg8[%c0_16, %c0_17] : memref<16x56xf32, #tpu.memory_space<vmem>>, vector<16x56xf32>
    tpu.vector_store %arg8[%c0_16, %c0_17], %33 {strides = array<i32>} : memref<16x56xf32, #tpu.memory_space<vmem>>, vector<16x56xf32>,
    %c0_i32_18 = arith.constant 0 : i32
    %35 = arith.cmpi eq, %arg1, %c0_i32_18 : i32
    %36 = arith.extui %35 : i1 to i32
    %c0_i32_19 = arith.constant 0 : i32
    %37 = arith.cmpi ne, %36, %c0_i32_19 : i32
    scf.if %37 {
      %c0_20 = arith.constant 0 : index
      %c0_21 = arith.constant 0 : index
      %38 = vector.load %arg7[%c0_20, %c0_21] : memref<16x56xf32, #tpu.memory_space<vmem>>, vector<16x56xf32>
      %39 = vector.shape_cast %38 : vector<16x56xf32> to vector<1x16x56xf32>
      %cst_22 = arith.constant dense<0.000000e+00> : vector<1xf32>
      %40 = vector.multi_reduction <add>, %39, %cst_22 [1, 2] : vector<1x16x56xf32> to vector<1xf32>
      %41 = vector.shape_cast %40 : vector<1xf32> to vector<1x1x1xf32>
      %42 = vector.extract %41[0, 0, 0] : f32 from vector<1x1x1xf32>
      %43 = vector.broadcast %42 : f32 to vector<1x8x128xf32>
      %c0_23 = arith.constant 0 : index
      %c0_24 = arith.constant 0 : index
      %c0_25 = arith.constant 0 : index
      %44 = vector.load %arg5[%c0_23, %c0_24, %c0_25] : memref<1x8x128xf32, #tpu.memory_space<vmem>>, vector<1x8x128xf32>
      tpu.vector_store %arg5[%c0_23, %c0_24, %c0_25], %43 {strides = array<i32>} : memref<1x8x128xf32, #tpu.memory_space<vmem>>, vector<1x8x128xf32>,
      %c0_26 = arith.constant 0 : index
      %c0_27 = arith.constant 0 : index
      %45 = vector.load %arg8[%c0_26, %c0_27] : memref<16x56xf32, #tpu.memory_space<vmem>>, vector<16x56xf32>
      %46 = vector.shape_cast %45 : vector<16x56xf32> to vector<1x16x56xf32>
      %cst_28 = arith.constant dense<0.000000e+00> : vector<1xf32>
      %47 = vector.multi_reduction <add>, %46, %cst_28 [1, 2] : vector<1x16x56xf32> to vector<1xf32>
      %48 = vector.shape_cast %47 : vector<1xf32> to vector<1x1x1xf32>
      %49 = vector.extract %48[0, 0, 0] : f32 from vector<1x1x1xf32>
      %50 = vector.broadcast %49 : f32 to vector<1x8x128xf32>
      %c0_29 = arith.constant 0 : index
      %c0_30 = arith.constant 0 : index
      %c0_31 = arith.constant 0 : index
      %51 = vector.load %arg6[%c0_29, %c0_30, %c0_31] : memref<1x8x128xf32, #tpu.memory_space<vmem>>, vector<1x8x128xf32>
      tpu.vector_store %arg6[%c0_29, %c0_30, %c0_31], %50 {strides = array<i32>} : memref<1x8x128xf32, #tpu.memory_space<vmem>>, vector<1x8x128xf32>,
    } else {
    }
    return
  }
  func.func @transform_0(%arg0: i32, %arg1: i32) -> (i32, i32) {
    %c1_i32 = arith.constant 1 : i32
    %0 = arith.muli %arg0, %c1_i32 : i32
    %1 = arith.addi %0, %arg1 : i32
    %c0_i32 = arith.constant 0 : i32
    %c0_i32_0 = arith.constant 0 : i32
    return %1, %c0_i32 : i32, i32
  }
  func.func @transform_1(%arg0: i32, %arg1: i32) -> (i32, i32) {
    %c1_i32 = arith.constant 1 : i32
    %0 = arith.muli %arg0, %c1_i32 : i32
    %1 = arith.addi %0, %arg1 : i32
    %c0_i32 = arith.constant 0 : i32
    %c0_i32_0 = arith.constant 0 : i32
    return %1, %c0_i32 : i32, i32
  }
  func.func @transform_2(%arg0: i32, %arg1: i32) -> (i32, i32) {
    %c0_i32 = arith.constant 0 : i32
    %c0_i32_0 = arith.constant 0 : i32
    %c0_i32_1 = arith.constant 0 : i32
    return %c0_i32, %c0_i32_0 : i32, i32
  }
  func.func @transform_3(%arg0: i32, %arg1: i32) -> (i32, i32, i32) {
    %c0_i32 = arith.constant 0 : i32
    %c0_i32_0 = arith.constant 0 : i32
    %c0_i32_1 = arith.constant 0 : i32
    return %arg0, %c0_i32, %c0_i32_0 : i32, i32, i32
  }
  func.func @transform_4(%arg0: i32, %arg1: i32) -> (i32, i32, i32) {
    %c0_i32 = arith.constant 0 : i32
    %c0_i32_0 = arith.constant 0 : i32
    %c0_i32_1 = arith.constant 0 : i32
    return %arg0, %c0_i32, %c0_i32_0 : i32, i32, i32
  }
}

</mosaic_0001>

<llo_original>
// kernel: vp_loss_pallas.1
$region0: #{vp_loss_pallas.1}
  #allocation0 [shape = 'u32[]', space=smem, size = 0x4, offset = 0x4, fixed_abs, tag = 'smem constant byte address 0x4 - core index']
  #allocation1 [shape = 'u32[144,128]{1,0:T(1,128)}', space=vmem, size = 0x12000, scoped, tag = 'internal scratch']
  #allocation2 [shape = 'f32[16,56]{1,0:T(8,128)}', space=vmem, size = 0x2000, scoped, tag = 'scratch operand']
  #allocation3 [shape = 'f32[16,56]{1,0:T(8,128)}', space=vmem, size = 0x2000, scoped, tag = 'scratch operand']
  %s0 = inlined_call_operand.vmem [shape: f32[32,56], index: 0, kind: input, shape index: {}]
  %s1 = inlined_call_operand.vmem [shape: f32[32,56], index: 1, kind: input, shape index: {}]
  %s2 = inlined_call_operand.vmem [shape: f32[1,56], index: 2, kind: input, shape index: {}]
  %s3 = inlined_call_operand.vmem [shape: f32[2,8,128], index: 3, kind: output, shape index: {0}]
  %s4 = inlined_call_operand.vmem [shape: f32[2,8,128], index: 4, kind: output, shape index: {1}]
  %5 = xla_tuple %s3, %s4
  %s6 = sld [smem:[#allocation0]]
  $region61: #{vp_loss_pallas.1} parent=0
    _
  %s8 = ssub.s32 1, %s6
  %s9 = scalar_select 0, %s8, %s6
  loop: start=0, step=1, limit=4
  $region2: #{vp_loss_pallas.1} parent=0 // loop_pre_header
    _
  $region3: #{vp_loss_pallas.1} parent=0 // loop_header
    %s11 = sphi 0, %s15
    %p12 = scmp.ge.s32.totalorder %s11, 4
    %s18 = sphi 0, %s30
    %s19 = sphi 0, %s26
    %s20 = sphi 0, %s18
    %s21 = sphi 0, %s19
    %s22 = sphi 0, %s20
    %s23 = sphi 0, %s21
    %s35 = sphi 0, %s37
    %s38 = sphi 0, %s35
    %s39 = sphi 0, %s38
    %s55 = sphi 0, %s39
    %s63 = sphi 0, %s65
    %s66 = sphi 0, %s63
    %s67 = sphi 0, %s66
    %s83 = sphi 0, %s67
    %s87 = sphi 0, %s87
    %s89 = sphi 0, %s87
    %s90 = sphi 0, %s89
    %s104 = sphi 0, %s90
    %s110 = sphi 0, %s112
    %s113 = sphi 0, %s110
    %s114 = sphi 0, %s113
    %s130 = sphi 0, %s114
    %s136 = sphi 0, %s138
    %s139 = sphi 0, %s136
    %s140 = sphi 0, %s139
    %s156 = sphi 0, %s140
  $region4: #{vp_loss_pallas.1} parent=0 // loop_header_branch
    %14 = sbr.rel (%p12) target = $region8
  $region5: #{vp_loss_pallas.1} parent=0 // loop_body
    %s16 = ssub.s32 %s11, 1
    %s17 = ssub.s32 %s11, 2
    %s24 = sadd.s32 1, %s19
    %p25 = scmp.ge.s32.totalorder %s24, 1
    %s26 = scalar_select %p25, 0, %s24
    %s27 = sadd.s32 1, %s18
    %s28 = scalar_select %p25, %s27, %s18
    %p29 = scmp.ge.s32.totalorder %s28, 2
    %s30 = scalar_select %p29, 0, %s28
    %s31 = sadd.s32 %s18, %s19
    %s32 = sadd.s32 %s30, %s26
    %s33 = ssub.s32 %s31, %s32
    %p34 = scmp.eq.s32.totalorder %s33, 0
    %s36 = sadd.s32 %s35, 1
    %s37 = scalar_select %p34, %s35, %s36
    %p40 = pneg %p34
    %p41 = scmp.eq.s32.totalorder %s11, 1
    %p42 = por %p40, %p41
    %p43 = scmp.ne.s32.totalorder %s35, %s38
    %p44 = scmp.eq.s32.totalorder %s11, 0
    %p45 = por %p43, %p44
    %p46 = scmp.ne.s32.totalorder %s35, %s38
    %p47 = scmp.eq.s32.totalorder %s16, 1
    %p48 = por %p46, %p47
    %p49 = scmp.ne.s32.totalorder %s38, %s39
    %p50 = scmp.eq.s32.totalorder %s16, 0
    %p51 = por %p49, %p50
    %p52 = scmp.ne.s32.totalorder %s38, %s39
    %p53 = scmp.eq.s32.totalorder %s17, 1
    %p54 = por %p52, %p53
    %p56 = scmp.ne.s32.totalorder %s39, %s55
    %p57 = scmp.eq.s32.totalorder %s17, 0
    %p58 = por %p56, %p57
    %s59 = sadd.s32 %s18, %s19
    %s60 = sadd.s32 %s30, %s26
    %s61 = ssub.s32 %s59, %s60
    %p62 = scmp.eq.s32.totalorder %s61, 0
    %s64 = sadd.s32 %s63, 1
    %s65 = scalar_select %p62, %s63, %s64
    %p68 = pneg %p62
    %p69 = scmp.eq.s32.totalorder %s11, 1
    %p70 = por %p68, %p69
    %p71 = scmp.ne.s32.totalorder %s63, %s66
    %p72 = scmp.eq.s32.totalorder %s11, 0
    %p73 = por %p71, %p72
    %p74 = scmp.ne.s32.totalorder %s63, %s66
    %p75 = scmp.eq.s32.totalorder %s16, 1
    %p76 = por %p74, %p75
    %p77 = scmp.ne.s32.totalorder %s66, %s67
    %p78 = scmp.eq.s32.totalorder %s16, 0
    %p79 = por %p77, %p78
    %p80 = scmp.ne.s32.totalorder %s66, %s67
    %p81 = scmp.eq.s32.totalorder %s17, 1
    %p82 = por %p80, %p81
    %p84 = scmp.ne.s32.totalorder %s67, %s83
    %p85 = scmp.eq.s32.totalorder %s17, 0
    %p86 = por %p84, %p85
    %s88 = sadd.s32 %s87, 1
    %p91 = scmp.eq.s32.totalorder %s11, 1
    %p92 = scmp.ne.s32.totalorder %s87, %s89
    %p93 = scmp.eq.s32.totalorder %s11, 0
    %p94 = por %p92, %p93
    %p95 = scmp.ne.s32.totalorder %s87, %s89
    %p96 = scmp.eq.s32.totalorder %s16, 1
    %p97 = por %p95, %p96
    %p98 = scmp.ne.s32.totalorder %s89, %s90
    %p99 = scmp.eq.s32.totalorder %s16, 0
    %p100 = por %p98, %p99
    %p101 = scmp.ne.s32.totalorder %s89, %s90
    %p102 = scmp.eq.s32.totalorder %s17, 1
    %p103 = por %p101, %p102
    %p105 = scmp.ne.s32.totalorder %s90, %s104
    %p106 = scmp.eq.s32.totalorder %s17, 0
    %p107 = por %p105, %p106
    %s108 = ssub.s32 %s18, %s30
    %p109 = scmp.eq.s32.totalorder %s108, 0
    %s111 = sadd.s32 %s110, 1
    %s112 = scalar_select %p109, %s110, %s111
    %p115 = pneg %p109
    %p116 = scmp.eq.s32.totalorder %s11, 1
    %p117 = por %p115, %p116
    %p118 = scmp.ne.s32.totalorder %s110, %s113
    %p119 = scmp.eq.s32.totalorder %s11, 0
    %p120 = por %p118, %p119
    %p121 = scmp.ne.s32.totalorder %s110, %s113
    %p122 = scmp.eq.s32.totalorder %s16, 1
    %p123 = por %p121, %p122
    %p124 = scmp.ne.s32.totalorder %s113, %s114
    %p125 = scmp.eq.s32.totalorder %s16, 0
    %p126 = por %p124, %p125
    %p127 = scmp.ne.s32.totalorder %s113, %s114
    %p128 = scmp.eq.s32.totalorder %s17, 1
    %p129 = por %p127, %p128
    %p131 = scmp.ne.s32.totalorder %s114, %s130
    %p132 = scmp.eq.s32.totalorder %s17, 0
    %p133 = por %p131, %p132
    %s134 = ssub.s32 %s18, %s30
    %p135 = scmp.eq.s32.totalorder %s134, 0
    %s137 = sadd.s32 %s136, 1
    %s138 = scalar_select %p135, %s136, %s137
    %p141 = pneg %p135
    %p142 = scmp.eq.s32.totalorder %s11, 1
    %p143 = por %p141, %p142
    %p144 = scmp.ne.s32.totalorder %s136, %s139
    %p145 = scmp.eq.s32.totalorder %s11, 0
    %p146 = por %p144, %p145
    %p147 = scmp.ne.s32.totalorder %s136, %s139
    %p148 = scmp.eq.s32.totalorder %s16, 1
    %p149 = por %p147, %p148
    %p150 = scmp.ne.s32.totalorder %s139, %s140
    %p151 = scmp.eq.s32.totalorder %s16, 0
    %p152 = por %p150, %p151
    %p153 = scmp.ne.s32.totalorder %s139, %s140
    %p154 = scmp.eq.s32.totalorder %s17, 1
    %p155 = por %p153, %p154
    %p157 = scmp.ne.s32.totalorder %s140, %s156
    %p158 = scmp.eq.s32.totalorder %s17, 0
    %p159 = por %p157, %p158
    %p160 = scmp.le.s32.totalorder 1, %s11
    %p161 = scmp.lt.s32.totalorder %s11, 3
    %p162 = pnand %p160, %p161
    %p163 = pneg %p162
    // Predicated region
    $region9: #{vp_loss_pallas.1} parent=5 // pred_check
      _
    $region10: #{vp_loss_pallas.1} parent=5 // pred_check_branch
      %165 = sbr.rel (%p162) target = $region12
    $region11: #{vp_loss_pallas.1} parent=5 // pred_region
      %s166 = ssub.s32 %s11, 1
      // Predicated region
      $region13: #{vp_loss_pallas.1} parent=11 // pred_check
        %p167 = pneg %p100
      $region14: #{vp_loss_pallas.1} parent=11 // pred_check_branch
        %169 = sbr.rel (%p167) target = $region16
      $region15: #{vp_loss_pallas.1} parent=11 // pred_region
        _
      $region16: #{vp_loss_pallas.1} parent=11 // pred_fallthru
        _
    $region12: #{vp_loss_pallas.1} parent=5 // pred_fallthru
      _
    %p170 = scmp.lt.s32.totalorder %s11, 2
    // Predicated region
    $region17: #{vp_loss_pallas.1} parent=5 // pred_check
      %p171 = pneg %p170
    $region18: #{vp_loss_pallas.1} parent=5 // pred_check_branch
      %173 = sbr.rel (%p171) target = $region20
    $region19: #{vp_loss_pallas.1} parent=5 // pred_region
      // Predicated region
      $region21: #{vp_loss_pallas.1} parent=19 // pred_check
        %p174 = pneg %p45
      $region22: #{vp_loss_pallas.1} parent=19 // pred_check_branch
        %176 = sbr.rel (%p174) target = $region24
      $region23: #{vp_loss_pallas.1} parent=19 // pred_region
        %s177 = sadd.s32 %s18, %s19
        %s178 = smul.u32 2, %s177
        %p179 = scmp.lt.s32.totalorder %s178, 3
        %s180 = scalar_select %p179, %s178, 3
        %s181 = smul.addr %s180, 8
        %s182 = scalar_lea.vmem %s0, %s181
        %s183 = sadd.s32 %s18, %s19
        %s184 = smul.u32 2, %s183
      $region24: #{vp_loss_pallas.1} parent=19 // pred_fallthru
        _
      // Predicated region
      $region25: #{vp_loss_pallas.1} parent=19 // pred_check
        %p185 = pneg %p73
      $region26: #{vp_loss_pallas.1} parent=19 // pred_check_branch
        %187 = sbr.rel (%p185) target = $region28
      $region27: #{vp_loss_pallas.1} parent=19 // pred_region
        %s188 = sadd.s32 %s18, %s19
        %s189 = smul.u32 2, %s188
        %p190 = scmp.lt.s32.totalorder %s189, 3
        %s191 = scalar_select %p190, %s189, 3
        %s192 = smul.addr %s191, 8
        %s193 = scalar_lea.vmem %s1, %s192
        %s194 = sadd.s32 %s18, %s19
        %s195 = smul.u32 2, %s194
      $region28: #{vp_loss_pallas.1} parent=19 // pred_fallthru
        _
    $region20: #{vp_loss_pallas.1} parent=5 // pred_fallthru
      _
    %p196 = scmp.le.s32.totalorder 1, %s11
    %p197 = scmp.lt.s32.totalorder %s11, 3
    %p198 = pnand %p196, %p197
    %p199 = pneg %p198
    // Predicated region
    $region29: #{vp_loss_pallas.1} parent=5 // pred_check
      _
    $region30: #{vp_loss_pallas.1} parent=5 // pred_check_branch
      %201 = sbr.rel (%p198) target = $region32
    $region31: #{vp_loss_pallas.1} parent=5 // pred_region
      %s202 = ssub.s32 %s11, 1
      %s203 = sadd.s32 %s20, %s21
      %s204 = smul.u32 2, %s203
      %p205 = scmp.lt.s32.totalorder %s204, 3
      %s206 = scalar_select %p205, %s204, 3
      %s207 = smul.addr %s206, 8
      %s208 = scalar_lea.vmem %s0, %s207
      %p209 = pneg %p51
      %p210 = pneg %p48
      %s211 = sadd.s32 %s20, %s21
      %s212 = smul.u32 2, %s211
      %p213 = scmp.lt.s32.totalorder %s212, 3
      %s214 = scalar_select %p213, %s212, 3
      %s215 = smul.addr %s214, 8
      %s216 = scalar_lea.vmem %s1, %s215
      %p217 = pneg %p79
      %p218 = pneg %p76
      %p219 = pneg %p100
      %p220 = pneg %p97
      %p221 = pneg %p126
      %p222 = pneg %p123
      %p223 = scmp.lt.s32.totalorder %s20, 1
      %s224 = scalar_select %p223, %s20, 1
      %s225 = smul.addr %s224, 8
      %s226 = scalar_lea.vmem %s3, %s225
      %p227 = pneg %p152
      %p228 = pneg %p149
      %p229 = scmp.lt.s32.totalorder %s20, 1
      %s230 = scalar_select %p229, %s20, 1
      %s231 = smul.addr %s230, 8
      %s232 = scalar_lea.vmem %s4, %s231
      %s233 = sadd.s32 %s20, %s21
      %s234 = smul.u32 2, %s233
      %p235 = scmp.lt.s32.totalorder %s234, 3
      %s236 = scalar_select %p235, %s234, 3
      %s237 = smul.addr %s236, 8
      %s238 = scalar_lea.vmem %s0, %s237
      %s239 = sadd.s32 %s20, %s21
      %s240 = smul.u32 2, %s239
      %s241 = sadd.s32 %s20, %s21
      %s242 = smul.u32 2, %s241
      %p243 = scmp.lt.s32.totalorder %s242, 3
      %s244 = scalar_select %p243, %s242, 3
      %s245 = smul.addr %s244, 8
      %s246 = scalar_lea.vmem %s1, %s245
      %s247 = sadd.s32 %s20, %s21
      %s248 = smul.u32 2, %s247
      %p249 = scmp.lt.s32.totalorder %s20, 1
      %s250 = scalar_select %p249, %s20, 1
      %s251 = smul.addr %s250, 8
      %s252 = scalar_lea.vmem %s3, %s251
      %p253 = scmp.lt.s32.totalorder %s20, 1
      %s254 = scalar_select %p253, %s20, 1
      %s255 = smul.addr %s254, 8
      %s256 = scalar_lea.vmem %s4, %s255
      %p257 = scmp.eq.s32.totalorder %s21, 0
      // Predicated region
      $region33: #{vp_loss_pallas.1} parent=31 // pred_check
        %p258 = pneg %p257
      $region34: #{vp_loss_pallas.1} parent=31 // pred_check_branch
        %260 = sbr.rel (%p258) target = $region36
      $region35: #{vp_loss_pallas.1} parent=31 // pred_region
        %vm261 = vcmask 457728
        %262 = vst.msk [vmem:[#allocation2] sm:$0xff] %vm261, 0.0
        %263 = vst.msk [vmem:[#allocation2 + $0x8] sm:$0xff] %vm261, 0.0
        %264 = vst.msk [vmem:[#allocation3] sm:$0xff] %vm261, 0.0
        %265 = vst.msk [vmem:[#allocation3 + $0x8] sm:$0xff] %vm261, 0.0
      $region36: #{vp_loss_pallas.1} parent=31 // pred_fallthru
        _
      %v266 = vld [vmem:[%s238] sm:$0xff]
      %v267 = vld [vmem:[%s238 + $0x8] sm:$0xff]
      %v268 = vld [vmem:[%s246] sm:$0xff]
      %v269 = vld [vmem:[%s246 + $0x8] sm:$0xff]
      %v270 = vld [vmem:[%s2] sm:$0x1]
      %v271 = vlaneseq
      %v272 = vand.u32 %v271, 127
      %vm273 = vcmp.eq.s32.totalorder %v272, 0
      %v274 = vxor.u32 %v266, 2147483648
      %v275 = vxor.u32 %v267, 2147483648
      %v276 = vmul.f32 %v274, 1.442695
      %v277 = vpow.pop %v276
      %v278 = vmul.f32 %v275, 1.442695
      %v279 = vpow.pop %v278
      %v280 = vadd.f32 %v277, 1.0
      %v281 = vadd.f32 %v279, 1.0
      %v282 = vrcp.pop %v280
      %v283 = vmul.f32 1.0, %v282
      %v284 = vrcp.pop %v281
      %v285 = vmul.f32 1.0, %v284
      %v286 = vsel %vm273, %v283, %v266
      %v287 = vsel %vm273, %v285, %v267
      %vm288 = vcmp.ne.f32.partialorder %v268, 0.0
      %vm289 = vcmp.ne.f32.partialorder %v269, 0.0
      %vm290 = vcmp.ne.f32.partialorder %v270, 0.0
      %v291 = vsel %vm290, 1, 0
      %v292 = vlaneseq
      %v293 = vshrl.u32 %v292, 7
      %v294 = vsub.s32 0, %v293
      %v295 = vrot.slane %v291, %v294
      %vm296 = vcmp.eq.s32.totalorder %v295, 1
      %vm297 = vmand %vm288, %vm296
      %vm298 = vmand %vm289, %vm296
      %v299 = vsub.f32 %v286, %v268
      %v300 = vsub.f32 %v287, %v269
      %v302 = vlaneseq
      %v303 = vshrl.u32 %v302, 7
      %v304 = vsub.s32 0, %v303
      %v305 = vrot.slane %v270, %v304
      %v307 = vmul.f32 %v299, %v305
      %v308 = vmul.f32 %v300, %v305
      %v309 = vand.u32 2147483647, %v307
      %v310 = vand.u32 2147483647, %v308
      %v311 = vld [vmem:[#allocation2] sm:$0xff]
      %v312 = vld [vmem:[#allocation2 + $0x8] sm:$0xff]
      %v313 = vsel %vm297, %v309, 0.0
      %v314 = vsel %vm298, %v310, 0.0
      %v315 = vadd.f32 %v311, %v313
      %v316 = vadd.f32 %v312, %v314
      %vm317 = vcmask 457728
      %318 = vst.msk [vmem:[#allocation2] sm:$0xff] %vm317, %v315
      %319 = vst.msk [vmem:[#allocation2 + $0x8] sm:$0xff] %vm317, %v316
      %v320 = vld [vmem:[#allocation3] sm:$0xff]
      %v321 = vld [vmem:[#allocation3 + $0x8] sm:$0xff]
      %v322 = vsel %vm297, 1, 0
      %v323 = vsel %vm298, 1, 0
      %v324 = vcvt.s32.f32 %v322
      %v325 = vcvt.s32.f32 %v323
      %v326 = vadd.f32 %v320, %v324
      %v327 = vadd.f32 %v321, %v325
      %328 = vst.msk [vmem:[#allocation3] sm:$0xff] %vm317, %v326
      %329 = vst.msk [vmem:[#allocation3 + $0x8] sm:$0xff] %vm317, %v327
      // Predicated region
      $region37: #{vp_loss_pallas.1} parent=31 // pred_check
        %p330 = pneg %p257
      $region38: #{vp_loss_pallas.1} parent=31 // pred_check_branch
        %332 = sbr.rel (%p330) target = $region40
      $region39: #{vp_loss_pallas.1} parent=31 // pred_region
        %v333 = vld [vmem:[#allocation2] sm:$0xff]
        %v334 = vld [vmem:[#allocation2 + $0x8] sm:$0xff]
        %v335 = vsel %vm317, %v333, 0.0
        %v336 = vsel %vm317, %v334, 0.0
        %v337 = vadd.f32 %v335, %v336
        %338 = vadd.xlane.f32.xlu0 %v337
        %v339 = vpop.xlane.xlu0 %338
        %v340 = vrot.slane %v339, 4
        %v341 = vadd.f32 %v339, %v340
        %v342 = vrot.slane %v341, 2
        %v343 = vadd.f32 %v341, %v342
        %v344 = vrot.slane %v343, 1
        %v345 = vadd.f32 %v343, %v344
        %s346 = vtos %v345
        %v347 = vstv %s346
        %348 = vst [vmem:[%s252] sm:$0xff] %v347
        %v349 = vld [vmem:[#allocation3] sm:$0xff]
        %v350 = vld [vmem:[#allocation3 + $0x8] sm:$0xff]
        %v351 = vsel %vm317, %v349, 0.0
        %v352 = vsel %vm317, %v350, 0.0
        %v353 = vadd.f32 %v351, %v352
        %354 = vadd.xlane.f32.xlu0 %v353
        %v355 = vpop.xlane.xlu0 %354
        %v356 = vrot.slane %v355, 4
        %v357 = vadd.f32 %v355, %v356
        %v358 = vrot.slane %v357, 2
        %v359 = vadd.f32 %v357, %v358
        %v360 = vrot.slane %v359, 1
        %v361 = vadd.f32 %v359, %v360
        %s362 = vtos %v361
        %v363 = vstv %s362
        %364 = vst [vmem:[%s256] sm:$0xff] %v363
      $region40: #{vp_loss_pallas.1} parent=31 // pred_fallthru
        _
      %p365 = scmp.lt.s32.totalorder %s20, 1
      %s366 = scalar_select %p365, %s20, 1
      %s367 = smul.addr %s366, 8
      %s368 = scalar_lea.vmem %s3, %s367
      %p369 = scmp.lt.s32.totalorder %s20, 1
      %s370 = scalar_select %p369, %s20, 1
      %s371 = smul.addr %s370, 8
      %s372 = scalar_lea.vmem %s4, %s371
      // Predicated region
      $region41: #{vp_loss_pallas.1} parent=31 // pred_check
        %p373 = pneg %p123
      $region42: #{vp_loss_pallas.1} parent=31 // pred_check_branch
        %375 = sbr.rel (%p373) target = $region44
      $region43: #{vp_loss_pallas.1} parent=31 // pred_region
        _
      $region44: #{vp_loss_pallas.1} parent=31 // pred_fallthru
        _
      // Predicated region
      $region45: #{vp_loss_pallas.1} parent=31 // pred_check
        %p376 = pneg %p149
      $region46: #{vp_loss_pallas.1} parent=31 // pred_check_branch
        %378 = sbr.rel (%p376) target = $region48
      $region47: #{vp_loss_pallas.1} parent=31 // pred_region
        _
      $region48: #{vp_loss_pallas.1} parent=31 // pred_fallthru
        _
    $region32: #{vp_loss_pallas.1} parent=5 // pred_fallthru
      _
    %p379 = scmp.le.s32.totalorder 2, %s11
    // Predicated region
    $region49: #{vp_loss_pallas.1} parent=5 // pred_check
      %p380 = pneg %p379
    $region50: #{vp_loss_pallas.1} parent=5 // pred_check_branch
      %382 = sbr.rel (%p380) target = $region52
    $region51: #{vp_loss_pallas.1} parent=5 // pred_region
      %s383 = ssub.s32 %s11, 2
      // Predicated region
      $region53: #{vp_loss_pallas.1} parent=51 // pred_check
        %p384 = pneg %p129
      $region54: #{vp_loss_pallas.1} parent=51 // pred_check_branch
        %386 = sbr.rel (%p384) target = $region56
      $region55: #{vp_loss_pallas.1} parent=51 // pred_region
        %p387 = scmp.lt.s32.totalorder %s22, 1
        %s388 = scalar_select %p387, %s22, 1
        %s389 = smul.addr %s388, 8
        %s390 = scalar_lea.vmem %s3, %s389
      $region56: #{vp_loss_pallas.1} parent=51 // pred_fallthru
        _
      // Predicated region
      $region57: #{vp_loss_pallas.1} parent=51 // pred_check
        %p391 = pneg %p155
      $region58: #{vp_loss_pallas.1} parent=51 // pred_check_branch
        %393 = sbr.rel (%p391) target = $region60
      $region59: #{vp_loss_pallas.1} parent=51 // pred_region
        %p394 = scmp.lt.s32.totalorder %s22, 1
        %s395 = scalar_select %p394, %s22, 1
        %s396 = smul.addr %s395, 8
        %s397 = scalar_lea.vmem %s4, %s396
      $region60: #{vp_loss_pallas.1} parent=51 // pred_fallthru
        _
    $region52: #{vp_loss_pallas.1} parent=5 // pred_fallthru
      _
  $region6: #{vp_loss_pallas.1} parent=0 // loop_footer
    %s15 = sadd.s32 1, %s11
  $region7: #{vp_loss_pallas.1} parent=0 // loop_footer_branch
    %10 = sbr.rel target = $region3
  $region8: #{vp_loss_pallas.1} parent=0 // loop_exit
    _

</llo_original>
